<compile_context>
chip_gen: v5e
topology: v5e:2x2
jax: 0.10.0
libtpu: 0.0.40
codegen_flags: <defaults>
</compile_context>

<pallas_src>
import jax
import jax.numpy as jnp
from jax.experimental import pallas as pl
from jax.experimental.pallas import tpu as pltpu


def _cdiv(a, b):
    return -(-a // b)


# ---------------------------------------------------------------------------
# Fast path: in_num == 1 and out_num == 1 (the module as instantiated).
# ---------------------------------------------------------------------------
def _scalar_mlp_kernel(a1_ref, c1_ref, a2_ref, bias_ref, x_ref, o_ref):
    """out = sum_j a2[j]*tanh(a1[j]*x + c1[j]) + bias, elementwise over x.

    x_ref/o_ref: (TR, 128) batch tile -- batch packed dense across sublanes
    AND lanes.  a1/c1/a2/bias: f32 scalars resident in SMEM.
    """
    x = x_ref[...]
    acc = jnp.zeros_like(x) + bias_ref[0]
    hidden = a1_ref.shape[0]
    for j in range(hidden):             # static unroll; hidden is small (e.g. 32)
        acc = acc + a2_ref[j] * jnp.tanh(a1_ref[j] * x + c1_ref[j])
    o_ref[...] = acc.astype(o_ref.dtype)


def _net_forward_1in_1out(x, w1, b1, w2, b2, *, max_rows_per_tile=64):
    """Specialized forward for in_num == 1, out_num == 1.  x: (B,1) -> (B,1)."""
    B = x.shape[0]
    hidden = w1.shape[0]

    # Fold sigmoid into a single tanh (done once on 32-element params; cheap):
    #   sum_j w2_j*sigmoid(w1_j*x+b1_j) + b2
    # = sum_j (w2_j/2)*tanh((w1_j*x+b1_j)/2) + (b2 + sum_j w2_j/2)
    a1 = 0.5 * w1.reshape(hidden)
    c1 = 0.5 * b1.reshape(hidden)
    a2 = 0.5 * w2.reshape(hidden)
    bias = b2.reshape(1) + jnp.sum(a2).reshape(1)

    # Batch -> dense (rows, 128) slab.  Pad only to the next multiple of 128
    # lanes (plus at most a few 8-row groups when the grid has several tiles).
    rows = _cdiv(B, 128)
    if rows <= max_rows_per_tile:
        tr, num_tiles = rows, 1                       # single full-array block
    else:
        num_tiles = _cdiv(rows, max_rows_per_tile)    # balanced tiles
        tr = _cdiv(_cdiv(rows, num_tiles), 8) * 8     # sublane (8) alignment
    b_pad = num_tiles * tr * 128

    xv = x.reshape(B)                                 # (B,1)->(B,): pure reshape
    if b_pad != B:
        # NOTE: padded lanes carry tanh(c1)-derived garbage in the padded
        # output region; it is sliced off below -- never reduce over it.
        xv = jnp.pad(xv, (0, b_pad - B))
    x2d = xv.reshape(num_tiles * tr, 128)

    smem = pl.BlockSpec(memory_space=pltpu.MemorySpace.SMEM)
    out2d = pl.pallas_call(
        _scalar_mlp_kernel,
        out_shape=jax.ShapeDtypeStruct((num_tiles * tr, 128), x.dtype),
        grid=(num_tiles,),
        in_specs=[smem, smem, smem, smem,
                  pl.BlockSpec((tr, 128), lambda i: (i, 0))],   # lane-dense x
        out_specs=pl.BlockSpec((tr, 128), lambda i: (i, 0)),    # lane-dense out
        compiler_params=pltpu.CompilerParams(
            dimension_semantics=("parallel",)),   # 2 TCs on v7x when >= 2 tiles
    )(a1, c1, a2, bias, x2d)

    return out2d.reshape(b_pad)[:B].reshape(B, 1)


# ---------------------------------------------------------------------------
# General fallback: in_num > 1 or out_num > 1 (transposed MXU dataflow).
# ---------------------------------------------------------------------------
def _general_mlp_kernel(xT_ref, w1_ref, b1_ref, w2_ref, b2_ref, oT_ref):
    xT = xT_ref[...]                                         # (in_num, TB)
    h = jnp.dot(w1_ref[...], xT,                             # (hidden, TB)
                preferred_element_type=jnp.float32)
    z = h + b1_ref[...]                                      # (hidden,1) bcast
    h1 = 0.5 * jnp.tanh(0.5 * z) + 0.5                       # sigmoid, 1 EUP op
    out = jnp.dot(w2_ref[...], h1,                           # native w2 layout
                  preferred_element_type=jnp.float32)        # (out_num, TB)
    oT_ref[...] = (out + b2_ref[...]).astype(oT_ref.dtype)


def _net_forward_general(x, w1, b1, w2, b2, *, max_batch_tile=2048):
    B, in_num = x.shape
    hidden = w1.shape[0]
    out_num = w2.shape[0]

    lanes = _cdiv(B, 128)
    num_tiles = _cdiv(lanes * 128, max_batch_tile)
    tb = _cdiv(lanes, num_tiles) * 128            # per-tile batch, mult of 128
    b_pad = num_tiles * tb

    xT = jnp.zeros((in_num, b_pad), x.dtype).at[:, :B].set(x.T)
    b1c = b1.reshape(hidden, 1)
    b2c = b2.reshape(out_num, 1)

    resident = lambda shape: pl.BlockSpec(shape, lambda i: (0, 0))
    oT = pl.pallas_call(
        _general_mlp_kernel,
        out_shape=jax.ShapeDtypeStruct((out_num, b_pad), x.dtype),
        grid=(num_tiles,),
        in_specs=[
            pl.BlockSpec((in_num, tb), lambda i: (0, i)),   # x tile, pipelined
            resident((hidden, in_num)),                     # W1 (VMEM-resident)
            resident((hidden, 1)),                          # b1
            resident((out_num, hidden)),                    # W2 (native layout)
            resident((out_num, 1)),                         # b2
        ],
        out_specs=pl.BlockSpec((out_num, tb), lambda i: (0, i)),   # lane-dense
        compiler_params=pltpu.CompilerParams(
            dimension_semantics=("parallel",)),
    )(xT, w1, b1c, w2, b2c)

    return oT[:, :B].T


def net_forward(x, w1, b1, w2, b2, **tile_kwargs):
    """Forward pass of Net.  PyTorch nn.Linear layouts:
    x: (B, in_num); w1: (hidden, in_num); b1: (hidden,);
    w2: (out_num, hidden); b2: (out_num,).  Returns (B, out_num)."""
    if w1.shape[1] == 1 and w2.shape[0] == 1:
        return _net_forward_1in_1out(x, w1, b1, w2, b2, **tile_kwargs)
    return _net_forward_general(x, w1, b1, w2, b2, **tile_kwargs)


def init_params(key, in_num, hidden_num, out_num, dtype=jnp.float32):
    """PyTorch-style init: U(-1/sqrt(fan_in), 1/sqrt(fan_in)), nn.Linear layout."""
    k1, k2, k3, k4 = jax.random.split(key, 4)
    bound1 = 1.0 / (in_num ** 0.5)
    bound2 = 1.0 / (hidden_num ** 0.5)
    w1 = jax.random.uniform(k1, (hidden_num, in_num), dtype, -bound1, bound1)
    b1 = jax.random.uniform(k2, (hidden_num,), dtype, -bound1, bound1)
    w2 = jax.random.uniform(k3, (out_num, hidden_num), dtype, -bound2, bound2)
    b2 = jax.random.uniform(k4, (out_num,), dtype, -bound2, bound2)
    return w1, b1, w2, b2


def _reference(x, w1, b1, w2, b2):
    hp = jax.lax.Precision.HIGHEST     # exact-f32 reference for comparison
    h = jax.nn.sigmoid(jnp.dot(x, w1.T, precision=hp) + b1)
    return jnp.dot(h, w2.T, precision=hp) + b2


if __name__ == "__main__":
    # Net(in_num=1, hidden_num=32, out_num=1) -- the sin(x) regressor.
    in_num, hidden_num, out_num = 1, 32, 1
    key = jax.random.PRNGKey(0)
    kx1, kx2, kx3, kp, kpg, kxg = jax.random.split(key, 6)
    w1, b1, w2, b2 = init_params(kp, in_num, hidden_num, out_num)
    params = (w1, b1, w2, b2)

    def check(out, x, prm, shape, atol=1e-5, rtol=1e-5):
        ref = _reference(x, *prm)
        assert out.shape == shape, (out.shape, shape)
        err = float(jnp.max(jnp.abs(out - ref)))
        assert jnp.allclose(out, ref, atol=atol, rtol=rtol), err

    # 1) Small batch: single dense (1, 128)-padded tile.
    x = jax.random.uniform(kx1, (8, in_num), jnp.float32, -jnp.pi, jnp.pi)
    out = net_forward(x, *params)
    jax.block_until_ready(out)
    check(out, x, params, (8, out_num))

    # 2) Ragged batch: 600 pads only to 640 (5 rows x 128 lanes), one block.
    x2 = jax.random.uniform(kx2, (600, in_num), jnp.float32, -jnp.pi, jnp.pi)
    out2 = net_forward(x2, *params)
    jax.block_until_ready(out2)
    check(out2, x2, params, (600, out_num))

    # 3) Multi-tile grid (pipelining + v7x 2-TC split) with a small tile cap
    #    so example shapes stay modest.
    x3 = jax.random.uniform(kx3, (2048, in_num), jnp.float32, -jnp.pi, jnp.pi)
    out3 = net_forward(x3, *params, max_rows_per_tile=8)
    jax.block_until_ready(out3)
    check(out3, x3, params, (2048, out_num))

    # 4) General-shape fallback sanity check (in_num > 1, out_num > 1).
    #    Looser tolerance: its matmuls go through MXU f32 passes.
    w1g, b1g, w2g, b2g = init_params(kpg, 4, 32, 3)
    xg = jax.random.uniform(kxg, (16, 4), jnp.float32, -1.0, 1.0)
    outg = net_forward(xg, w1g, b1g, w2g, b2g)
    jax.block_until_ready(outg)
    check(outg, xg, (w1g, b1g, w2g, b2g), (16, 3), atol=5e-3, rtol=5e-3)

    print("KERNEL_OK")
</pallas_src>

<mosaic_0001>
module attributes {stable_mosaic.version = 11 : i64} {
  func.func @_scalar_mlp_kernel(%arg0: i32, %arg1: memref<32xf32, #tpu.memory_space<smem>>, %arg2: memref<32xf32, #tpu.memory_space<smem>>, %arg3: memref<32xf32, #tpu.memory_space<smem>>, %arg4: memref<1xf32, #tpu.memory_space<smem>>, %arg5: memref<1x128xf32, #tpu.memory_space<vmem>>, %arg6: memref<1x128xf32, #tpu.memory_space<vmem>>) attributes {dimension_semantics = [#tpu.dimension_semantics<parallel>], iteration_bounds = array<i64: 1>, scalar_prefetch = 0 : i64, scratch_operands = 0 : i64, tpu.core_type = #tpu.core_type<tc>, window_params = [{transform_indices = @transform_0, window_bounds = array<i64: 32>}, {transform_indices = @transform_1, window_bounds = array<i64: 32>}, {transform_indices = @transform_2, window_bounds = array<i64: 32>}, {transform_indices = @transform_3, window_bounds = array<i64: 1>}, {transform_indices = @transform_4, window_bounds = array<i64: 1, 128>}, {transform_indices = @transform_5, window_bounds = array<i64: 1, 128>}]} {
    %c0 = arith.constant 0 : index
    %c0_0 = arith.constant 0 : index
    %0 = vector.load %arg5[%c0, %c0_0] : memref<1x128xf32, #tpu.memory_space<vmem>>, vector<1x128xf32>
    %cst = arith.constant 0.000000e+00 : f32
    %1 = vector.broadcast %cst : f32 to vector<1x128xf32>
    %c0_1 = arith.constant 0 : index
    %2 = memref.load %arg4[%c0_1] : memref<1xf32, #tpu.memory_space<smem>>
    %3 = vector.broadcast %2 : f32 to vector<1x128xf32>
    %4 = arith.addf %1, %3 : vector<1x128xf32>
    %c0_2 = arith.constant 0 : index
    %5 = memref.load %arg3[%c0_2] : memref<32xf32, #tpu.memory_space<smem>>
    %c0_3 = arith.constant 0 : index
    %6 = memref.load %arg1[%c0_3] : memref<32xf32, #tpu.memory_space<smem>>
    %7 = vector.broadcast %6 : f32 to vector<1x128xf32>
    %8 = arith.mulf %7, %0 : vector<1x128xf32>
    %c0_4 = arith.constant 0 : index
    %9 = memref.load %arg2[%c0_4] : memref<32xf32, #tpu.memory_space<smem>>
    %10 = vector.broadcast %9 : f32 to vector<1x128xf32>
    %11 = arith.addf %8, %10 : vector<1x128xf32>
    %12 = math.tanh %11 : vector<1x128xf32>
    %13 = vector.broadcast %5 : f32 to vector<1x128xf32>
    %14 = arith.mulf %13, %12 : vector<1x128xf32>
    %15 = arith.addf %4, %14 : vector<1x128xf32>
    %c1 = arith.constant 1 : index
    %16 = memref.load %arg3[%c1] : memref<32xf32, #tpu.memory_space<smem>>
    %c1_5 = arith.constant 1 : index
    %17 = memref.load %arg1[%c1_5] : memref<32xf32, #tpu.memory_space<smem>>
    %18 = vector.broadcast %17 : f32 to vector<1x128xf32>
    %19 = arith.mulf %18, %0 : vector<1x128xf32>
    %c1_6 = arith.constant 1 : index
    %20 = memref.load %arg2[%c1_6] : memref<32xf32, #tpu.memory_space<smem>>
    %21 = vector.broadcast %20 : f32 to vector<1x128xf32>
    %22 = arith.addf %19, %21 : vector<1x128xf32>
    %23 = math.tanh %22 : vector<1x128xf32>
    %24 = vector.broadcast %16 : f32 to vector<1x128xf32>
    %25 = arith.mulf %24, %23 : vector<1x128xf32>
    %26 = arith.addf %15, %25 : vector<1x128xf32>
    %c2 = arith.constant 2 : index
    %27 = memref.load %arg3[%c2] : memref<32xf32, #tpu.memory_space<smem>>
    %c2_7 = arith.constant 2 : index
    %28 = memref.load %arg1[%c2_7] : memref<32xf32, #tpu.memory_space<smem>>
    %29 = vector.broadcast %28 : f32 to vector<1x128xf32>
    %30 = arith.mulf %29, %0 : vector<1x128xf32>
    %c2_8 = arith.constant 2 : index
    %31 = memref.load %arg2[%c2_8] : memref<32xf32, #tpu.memory_space<smem>>
    %32 = vector.broadcast %31 : f32 to vector<1x128xf32>
    %33 = arith.addf %30, %32 : vector<1x128xf32>
    %34 = math.tanh %33 : vector<1x128xf32>
    %35 = vector.broadcast %27 : f32 to vector<1x128xf32>
    %36 = arith.mulf %35, %34 : vector<1x128xf32>
    %37 = arith.addf %26, %36 : vector<1x128xf32>
    %c3 = arith.constant 3 : index
    %38 = memref.load %arg3[%c3] : memref<32xf32, #tpu.memory_space<smem>>
    %c3_9 = arith.constant 3 : index
    %39 = memref.load %arg1[%c3_9] : memref<32xf32, #tpu.memory_space<smem>>
    %40 = vector.broadcast %39 : f32 to vector<1x128xf32>
    %41 = arith.mulf %40, %0 : vector<1x128xf32>
    %c3_10 = arith.constant 3 : index
    %42 = memref.load %arg2[%c3_10] : memref<32xf32, #tpu.memory_space<smem>>
    %43 = vector.broadcast %42 : f32 to vector<1x128xf32>
    %44 = arith.addf %41, %43 : vector<1x128xf32>
    %45 = math.tanh %44 : vector<1x128xf32>
    %46 = vector.broadcast %38 : f32 to vector<1x128xf32>
    %47 = arith.mulf %46, %45 : vector<1x128xf32>
    %48 = arith.addf %37, %47 : vector<1x128xf32>
    %c4 = arith.constant 4 : index
    %49 = memref.load %arg3[%c4] : memref<32xf32, #tpu.memory_space<smem>>
    %c4_11 = arith.constant 4 : index
    %50 = memref.load %arg1[%c4_11] : memref<32xf32, #tpu.memory_space<smem>>
    %51 = vector.broadcast %50 : f32 to vector<1x128xf32>
    %52 = arith.mulf %51, %0 : vector<1x128xf32>
    %c4_12 = arith.constant 4 : index
    %53 = memref.load %arg2[%c4_12] : memref<32xf32, #tpu.memory_space<smem>>
    %54 = vector.broadcast %53 : f32 to vector<1x128xf32>
    %55 = arith.addf %52, %54 : vector<1x128xf32>
    %56 = math.tanh %55 : vector<1x128xf32>
    %57 = vector.broadcast %49 : f32 to vector<1x128xf32>
    %58 = arith.mulf %57, %56 : vector<1x128xf32>
    %59 = arith.addf %48, %58 : vector<1x128xf32>
    %c5 = arith.constant 5 : index
    %60 = memref.load %arg3[%c5] : memref<32xf32, #tpu.memory_space<smem>>
    %c5_13 = arith.constant 5 : index
    %61 = memref.load %arg1[%c5_13] : memref<32xf32, #tpu.memory_space<smem>>
    %62 = vector.broadcast %61 : f32 to vector<1x128xf32>
    %63 = arith.mulf %62, %0 : vector<1x128xf32>
    %c5_14 = arith.constant 5 : index
    %64 = memref.load %arg2[%c5_14] : memref<32xf32, #tpu.memory_space<smem>>
    %65 = vector.broadcast %64 : f32 to vector<1x128xf32>
    %66 = arith.addf %63, %65 : vector<1x128xf32>
    %67 = math.tanh %66 : vector<1x128xf32>
    %68 = vector.broadcast %60 : f32 to vector<1x128xf32>
    %69 = arith.mulf %68, %67 : vector<1x128xf32>
    %70 = arith.addf %59, %69 : vector<1x128xf32>
    %c6 = arith.constant 6 : index
    %71 = memref.load %arg3[%c6] : memref<32xf32, #tpu.memory_space<smem>>
    %c6_15 = arith.constant 6 : index
    %72 = memref.load %arg1[%c6_15] : memref<32xf32, #tpu.memory_space<smem>>
    %73 = vector.broadcast %72 : f32 to vector<1x128xf32>
    %74 = arith.mulf %73, %0 : vector<1x128xf32>
    %c6_16 = arith.constant 6 : index
    %75 = memref.load %arg2[%c6_16] : memref<32xf32, #tpu.memory_space<smem>>
    %76 = vector.broadcast %75 : f32 to vector<1x128xf32>
    %77 = arith.addf %74, %76 : vector<1x128xf32>
    %78 = math.tanh %77 : vector<1x128xf32>
    %79 = vector.broadcast %71 : f32 to vector<1x128xf32>
    %80 = arith.mulf %79, %78 : vector<1x128xf32>
    %81 = arith.addf %70, %80 : vector<1x128xf32>
    %c7 = arith.constant 7 : index
    %82 = memref.load %arg3[%c7] : memref<32xf32, #tpu.memory_space<smem>>
    %c7_17 = arith.constant 7 : index
    %83 = memref.load %arg1[%c7_17] : memref<32xf32, #tpu.memory_space<smem>>
    %84 = vector.broadcast %83 : f32 to vector<1x128xf32>
    %85 = arith.mulf %84, %0 : vector<1x128xf32>
    %c7_18 = arith.constant 7 : index
    %86 = memref.load %arg2[%c7_18] : memref<32xf32, #tpu.memory_space<smem>>
    %87 = vector.broadcast %86 : f32 to vector<1x128xf32>
    %88 = arith.addf %85, %87 : vector<1x128xf32>
    %89 = math.tanh %88 : vector<1x128xf32>
    %90 = vector.broadcast %82 : f32 to vector<1x128xf32>
    %91 = arith.mulf %90, %89 : vector<1x128xf32>
    %92 = arith.addf %81, %91 : vector<1x128xf32>
    %c8 = arith.constant 8 : index
    %93 = memref.load %arg3[%c8] : memref<32xf32, #tpu.memory_space<smem>>
    %c8_19 = arith.constant 8 : index
    %94 = memref.load %arg1[%c8_19] : memref<32xf32, #tpu.memory_space<smem>>
    %95 = vector.broadcast %94 : f32 to vector<1x128xf32>
    %96 = arith.mulf %95, %0 : vector<1x128xf32>
    %c8_20 = arith.constant 8 : index
    %97 = memref.load %arg2[%c8_20] : memref<32xf32, #tpu.memory_space<smem>>
    %98 = vector.broadcast %97 : f32 to vector<1x128xf32>
    %99 = arith.addf %96, %98 : vector<1x128xf32>
    %100 = math.tanh %99 : vector<1x128xf32>
    %101 = vector.broadcast %93 : f32 to vector<1x128xf32>
    %102 = arith.mulf %101, %100 : vector<1x128xf32>
    %103 = arith.addf %92, %102 : vector<1x128xf32>
    %c9 = arith.constant 9 : index
    %104 = memref.load %arg3[%c9] : memref<32xf32, #tpu.memory_space<smem>>
    %c9_21 = arith.constant 9 : index
    %105 = memref.load %arg1[%c9_21] : memref<32xf32, #tpu.memory_space<smem>>
    %106 = vector.broadcast %105 : f32 to vector<1x128xf32>
    %107 = arith.mulf %106, %0 : vector<1x128xf32>
    %c9_22 = arith.constant 9 : index
    %108 = memref.load %arg2[%c9_22] : memref<32xf32, #tpu.memory_space<smem>>
    %109 = vector.broadcast %108 : f32 to vector<1x128xf32>
    %110 = arith.addf %107, %109 : vector<1x128xf32>
    %111 = math.tanh %110 : vector<1x128xf32>
    %112 = vector.broadcast %104 : f32 to vector<1x128xf32>
    %113 = arith.mulf %112, %111 : vector<1x128xf32>
    %114 = arith.addf %103, %113 : vector<1x128xf32>
    %c10 = arith.constant 10 : index
    %115 = memref.load %arg3[%c10] : memref<32xf32, #tpu.memory_space<smem>>
    %c10_23 = arith.constant 10 : index
    %116 = memref.load %arg1[%c10_23] : memref<32xf32, #tpu.memory_space<smem>>
    %117 = vector.broadcast %116 : f32 to vector<1x128xf32>
    %118 = arith.mulf %117, %0 : vector<1x128xf32>
    %c10_24 = arith.constant 10 : index
    %119 = memref.load %arg2[%c10_24] : memref<32xf32, #tpu.memory_space<smem>>
    %120 = vector.broadcast %119 : f32 to vector<1x128xf32>
    %121 = arith.addf %118, %120 : vector<1x128xf32>
    %122 = math.tanh %121 : vector<1x128xf32>
    %123 = vector.broadcast %115 : f32 to vector<1x128xf32>
    %124 = arith.mulf %123, %122 : vector<1x128xf32>
    %125 = arith.addf %114, %124 : vector<1x128xf32>
    %c11 = arith.constant 11 : index
    %126 = memref.load %arg3[%c11] : memref<32xf32, #tpu.memory_space<smem>>
    %c11_25 = arith.constant 11 : index
    %127 = memref.load %arg1[%c11_25] : memref<32xf32, #tpu.memory_space<smem>>
    %128 = vector.broadcast %127 : f32 to vector<1x128xf32>
    %129 = arith.mulf %128, %0 : vector<1x128xf32>
    %c11_26 = arith.constant 11 : index
    %130 = memref.load %arg2[%c11_26] : memref<32xf32, #tpu.memory_space<smem>>
    %131 = vector.broadcast %130 : f32 to vector<1x128xf32>
    %132 = arith.addf %129, %131 : vector<1x128xf32>
    %133 = math.tanh %132 : vector<1x128xf32>
    %134 = vector.broadcast %126 : f32 to vector<1x128xf32>
    %135 = arith.mulf %134, %133 : vector<1x128xf32>
    %136 = arith.addf %125, %135 : vector<1x128xf32>
    %c12 = arith.constant 12 : index
    %137 = memref.load %arg3[%c12] : memref<32xf32, #tpu.memory_space<smem>>
    %c12_27 = arith.constant 12 : index
    %138 = memref.load %arg1[%c12_27] : memref<32xf32, #tpu.memory_space<smem>>
    %139 = vector.broadcast %138 : f32 to vector<1x128xf32>
    %140 = arith.mulf %139, %0 : vector<1x128xf32>
    %c12_28 = arith.constant 12 : index
    %141 = memref.load %arg2[%c12_28] : memref<32xf32, #tpu.memory_space<smem>>
    %142 = vector.broadcast %141 : f32 to vector<1x128xf32>
    %143 = arith.addf %140, %142 : vector<1x128xf32>
    %144 = math.tanh %143 : vector<1x128xf32>
    %145 = vector.broadcast %137 : f32 to vector<1x128xf32>
    %146 = arith.mulf %145, %144 : vector<1x128xf32>
    %147 = arith.addf %136, %146 : vector<1x128xf32>
    %c13 = arith.constant 13 : index
    %148 = memref.load %arg3[%c13] : memref<32xf32, #tpu.memory_space<smem>>
    %c13_29 = arith.constant 13 : index
    %149 = memref.load %arg1[%c13_29] : memref<32xf32, #tpu.memory_space<smem>>
    %150 = vector.broadcast %149 : f32 to vector<1x128xf32>
    %151 = arith.mulf %150, %0 : vector<1x128xf32>
    %c13_30 = arith.constant 13 : index
    %152 = memref.load %arg2[%c13_30] : memref<32xf32, #tpu.memory_space<smem>>
    %153 = vector.broadcast %152 : f32 to vector<1x128xf32>
    %154 = arith.addf %151, %153 : vector<1x128xf32>
    %155 = math.tanh %154 : vector<1x128xf32>
    %156 = vector.broadcast %148 : f32 to vector<1x128xf32>
    %157 = arith.mulf %156, %155 : vector<1x128xf32>
    %158 = arith.addf %147, %157 : vector<1x128xf32>
    %c14 = arith.constant 14 : index
    %159 = memref.load %arg3[%c14] : memref<32xf32, #tpu.memory_space<smem>>
    %c14_31 = arith.constant 14 : index
    %160 = memref.load %arg1[%c14_31] : memref<32xf32, #tpu.memory_space<smem>>
    %161 = vector.broadcast %160 : f32 to vector<1x128xf32>
    %162 = arith.mulf %161, %0 : vector<1x128xf32>
    %c14_32 = arith.constant 14 : index
    %163 = memref.load %arg2[%c14_32] : memref<32xf32, #tpu.memory_space<smem>>
    %164 = vector.broadcast %163 : f32 to vector<1x128xf32>
    %165 = arith.addf %162, %164 : vector<1x128xf32>
    %166 = math.tanh %165 : vector<1x128xf32>
    %167 = vector.broadcast %159 : f32 to vector<1x128xf32>
    %168 = arith.mulf %167, %166 : vector<1x128xf32>
    %169 = arith.addf %158, %168 : vector<1x128xf32>
    %c15 = arith.constant 15 : index
    %170 = memref.load %arg3[%c15] : memref<32xf32, #tpu.memory_space<smem>>
    %c15_33 = arith.constant 15 : index
    %171 = memref.load %arg1[%c15_33] : memref<32xf32, #tpu.memory_space<smem>>
    %172 = vector.broadcast %171 : f32 to vector<1x128xf32>
    %173 = arith.mulf %172, %0 : vector<1x128xf32>
    %c15_34 = arith.constant 15 : index
    %174 = memref.load %arg2[%c15_34] : memref<32xf32, #tpu.memory_space<smem>>
    %175 = vector.broadcast %174 : f32 to vector<1x128xf32>
    %176 = arith.addf %173, %175 : vector<1x128xf32>
    %177 = math.tanh %176 : vector<1x128xf32>
    %178 = vector.broadcast %170 : f32 to vector<1x128xf32>
    %179 = arith.mulf %178, %177 : vector<1x128xf32>
    %180 = arith.addf %169, %179 : vector<1x128xf32>
    %c16 = arith.constant 16 : index
    %181 = memref.load %arg3[%c16] : memref<32xf32, #tpu.memory_space<smem>>
    %c16_35 = arith.constant 16 : index
    %182 = memref.load %arg1[%c16_35] : memref<32xf32, #tpu.memory_space<smem>>
    %183 = vector.broadcast %182 : f32 to vector<1x128xf32>
    %184 = arith.mulf %183, %0 : vector<1x128xf32>
    %c16_36 = arith.constant 16 : index
    %185 = memref.load %arg2[%c16_36] : memref<32xf32, #tpu.memory_space<smem>>
    %186 = vector.broadcast %185 : f32 to vector<1x128xf32>
    %187 = arith.addf %184, %186 : vector<1x128xf32>
    %188 = math.tanh %187 : vector<1x128xf32>
    %189 = vector.broadcast %181 : f32 to vector<1x128xf32>
    %190 = arith.mulf %189, %188 : vector<1x128xf32>
    %191 = arith.addf %180, %190 : vector<1x128xf32>
    %c17 = arith.constant 17 : index
    %192 = memref.load %arg3[%c17] : memref<32xf32, #tpu.memory_space<smem>>
    %c17_37 = arith.constant 17 : index
    %193 = memref.load %arg1[%c17_37] : memref<32xf32, #tpu.memory_space<smem>>
    %194 = vector.broadcast %193 : f32 to vector<1x128xf32>
    %195 = arith.mulf %194, %0 : vector<1x128xf32>
    %c17_38 = arith.constant 17 : index
    %196 = memref.load %arg2[%c17_38] : memref<32xf32, #tpu.memory_space<smem>>
    %197 = vector.broadcast %196 : f32 to vector<1x128xf32>
    %198 = arith.addf %195, %197 : vector<1x128xf32>
    %199 = math.tanh %198 : vector<1x128xf32>
    %200 = vector.broadcast %192 : f32 to vector<1x128xf32>
    %201 = arith.mulf %200, %199 : vector<1x128xf32>
    %202 = arith.addf %191, %201 : vector<1x128xf32>
    %c18 = arith.constant 18 : index
    %203 = memref.load %arg3[%c18] : memref<32xf32, #tpu.memory_space<smem>>
    %c18_39 = arith.constant 18 : index
    %204 = memref.load %arg1[%c18_39] : memref<32xf32, #tpu.memory_space<smem>>
    %205 = vector.broadcast %204 : f32 to vector<1x128xf32>
    %206 = arith.mulf %205, %0 : vector<1x128xf32>
    %c18_40 = arith.constant 18 : index
    %207 = memref.load %arg2[%c18_40] : memref<32xf32, #tpu.memory_space<smem>>
    %208 = vector.broadcast %207 : f32 to vector<1x128xf32>
    %209 = arith.addf %206, %208 : vector<1x128xf32>
    %210 = math.tanh %209 : vector<1x128xf32>
    %211 = vector.broadcast %203 : f32 to vector<1x128xf32>
    %212 = arith.mulf %211, %210 : vector<1x128xf32>
    %213 = arith.addf %202, %212 : vector<1x128xf32>
    %c19 = arith.constant 19 : index
    %214 = memref.load %arg3[%c19] : memref<32xf32, #tpu.memory_space<smem>>
    %c19_41 = arith.constant 19 : index
    %215 = memref.load %arg1[%c19_41] : memref<32xf32, #tpu.memory_space<smem>>
    %216 = vector.broadcast %215 : f32 to vector<1x128xf32>
    %217 = arith.mulf %216, %0 : vector<1x128xf32>
    %c19_42 = arith.constant 19 : index
    %218 = memref.load %arg2[%c19_42] : memref<32xf32, #tpu.memory_space<smem>>
    %219 = vector.broadcast %218 : f32 to vector<1x128xf32>
    %220 = arith.addf %217, %219 : vector<1x128xf32>
    %221 = math.tanh %220 : vector<1x128xf32>
    %222 = vector.broadcast %214 : f32 to vector<1x128xf32>
    %223 = arith.mulf %222, %221 : vector<1x128xf32>
    %224 = arith.addf %213, %223 : vector<1x128xf32>
    %c20 = arith.constant 20 : index
    %225 = memref.load %arg3[%c20] : memref<32xf32, #tpu.memory_space<smem>>
    %c20_43 = arith.constant 20 : index
    %226 = memref.load %arg1[%c20_43] : memref<32xf32, #tpu.memory_space<smem>>
    %227 = vector.broadcast %226 : f32 to vector<1x128xf32>
    %228 = arith.mulf %227, %0 : vector<1x128xf32>
    %c20_44 = arith.constant 20 : index
    %229 = memref.load %arg2[%c20_44] : memref<32xf32, #tpu.memory_space<smem>>
    %230 = vector.broadcast %229 : f32 to vector<1x128xf32>
    %231 = arith.addf %228, %230 : vector<1x128xf32>
    %232 = math.tanh %231 : vector<1x128xf32>
    %233 = vector.broadcast %225 : f32 to vector<1x128xf32>
    %234 = arith.mulf %233, %232 : vector<1x128xf32>
    %235 = arith.addf %224, %234 : vector<1x128xf32>
    %c21 = arith.constant 21 : index
    %236 = memref.load %arg3[%c21] : memref<32xf32, #tpu.memory_space<smem>>
    %c21_45 = arith.constant 21 : index
    %237 = memref.load %arg1[%c21_45] : memref<32xf32, #tpu.memory_space<smem>>
    %238 = vector.broadcast %237 : f32 to vector<1x128xf32>
    %239 = arith.mulf %238, %0 : vector<1x128xf32>
    %c21_46 = arith.constant 21 : index
    %240 = memref.load %arg2[%c21_46] : memref<32xf32, #tpu.memory_space<smem>>
    %241 = vector.broadcast %240 : f32 to vector<1x128xf32>
    %242 = arith.addf %239, %241 : vector<1x128xf32>
    %243 = math.tanh %242 : vector<1x128xf32>
    %244 = vector.broadcast %236 : f32 to vector<1x128xf32>
    %245 = arith.mulf %244, %243 : vector<1x128xf32>
    %246 = arith.addf %235, %245 : vector<1x128xf32>
    %c22 = arith.constant 22 : index
    %247 = memref.load %arg3[%c22] : memref<32xf32, #tpu.memory_space<smem>>
    %c22_47 = arith.constant 22 : index
    %248 = memref.load %arg1[%c22_47] : memref<32xf32, #tpu.memory_space<smem>>
    %249 = vector.broadcast %248 : f32 to vector<1x128xf32>
    %250 = arith.mulf %249, %0 : vector<1x128xf32>
    %c22_48 = arith.constant 22 : index
    %251 = memref.load %arg2[%c22_48] : memref<32xf32, #tpu.memory_space<smem>>
    %252 = vector.broadcast %251 : f32 to vector<1x128xf32>
    %253 = arith.addf %250, %252 : vector<1x128xf32>
    %254 = math.tanh %253 : vector<1x128xf32>
    %255 = vector.broadcast %247 : f32 to vector<1x128xf32>
    %256 = arith.mulf %255, %254 : vector<1x128xf32>
    %257 = arith.addf %246, %256 : vector<1x128xf32>
    %c23 = arith.constant 23 : index
    %258 = memref.load %arg3[%c23] : memref<32xf32, #tpu.memory_space<smem>>
    %c23_49 = arith.constant 23 : index
    %259 = memref.load %arg1[%c23_49] : memref<32xf32, #tpu.memory_space<smem>>
    %260 = vector.broadcast %259 : f32 to vector<1x128xf32>
    %261 = arith.mulf %260, %0 : vector<1x128xf32>
    %c23_50 = arith.constant 23 : index
    %262 = memref.load %arg2[%c23_50] : memref<32xf32, #tpu.memory_space<smem>>
    %263 = vector.broadcast %262 : f32 to vector<1x128xf32>
    %264 = arith.addf %261, %263 : vector<1x128xf32>
    %265 = math.tanh %264 : vector<1x128xf32>
    %266 = vector.broadcast %258 : f32 to vector<1x128xf32>
    %267 = arith.mulf %266, %265 : vector<1x128xf32>
    %268 = arith.addf %257, %267 : vector<1x128xf32>
    %c24 = arith.constant 24 : index
    %269 = memref.load %arg3[%c24] : memref<32xf32, #tpu.memory_space<smem>>
    %c24_51 = arith.constant 24 : index
    %270 = memref.load %arg1[%c24_51] : memref<32xf32, #tpu.memory_space<smem>>
    %271 = vector.broadcast %270 : f32 to vector<1x128xf32>
    %272 = arith.mulf %271, %0 : vector<1x128xf32>
    %c24_52 = arith.constant 24 : index
    %273 = memref.load %arg2[%c24_52] : memref<32xf32, #tpu.memory_space<smem>>
    %274 = vector.broadcast %273 : f32 to vector<1x128xf32>
    %275 = arith.addf %272, %274 : vector<1x128xf32>
    %276 = math.tanh %275 : vector<1x128xf32>
    %277 = vector.broadcast %269 : f32 to vector<1x128xf32>
    %278 = arith.mulf %277, %276 : vector<1x128xf32>
    %279 = arith.addf %268, %278 : vector<1x128xf32>
    %c25 = arith.constant 25 : index
    %280 = memref.load %arg3[%c25] : memref<32xf32, #tpu.memory_space<smem>>
    %c25_53 = arith.constant 25 : index
    %281 = memref.load %arg1[%c25_53] : memref<32xf32, #tpu.memory_space<smem>>
    %282 = vector.broadcast %281 : f32 to vector<1x128xf32>
    %283 = arith.mulf %282, %0 : vector<1x128xf32>
    %c25_54 = arith.constant 25 : index
    %284 = memref.load %arg2[%c25_54] : memref<32xf32, #tpu.memory_space<smem>>
    %285 = vector.broadcast %284 : f32 to vector<1x128xf32>
    %286 = arith.addf %283, %285 : vector<1x128xf32>
    %287 = math.tanh %286 : vector<1x128xf32>
    %288 = vector.broadcast %280 : f32 to vector<1x128xf32>
    %289 = arith.mulf %288, %287 : vector<1x128xf32>
    %290 = arith.addf %279, %289 : vector<1x128xf32>
    %c26 = arith.constant 26 : index
    %291 = memref.load %arg3[%c26] : memref<32xf32, #tpu.memory_space<smem>>
    %c26_55 = arith.constant 26 : index
    %292 = memref.load %arg1[%c26_55] : memref<32xf32, #tpu.memory_space<smem>>
    %293 = vector.broadcast %292 : f32 to vector<1x128xf32>
    %294 = arith.mulf %293, %0 : vector<1x128xf32>
    %c26_56 = arith.constant 26 : index
    %295 = memref.load %arg2[%c26_56] : memref<32xf32, #tpu.memory_space<smem>>
    %296 = vector.broadcast %295 : f32 to vector<1x128xf32>
    %297 = arith.addf %294, %296 : vector<1x128xf32>
    %298 = math.tanh %297 : vector<1x128xf32>
    %299 = vector.broadcast %291 : f32 to vector<1x128xf32>
    %300 = arith.mulf %299, %298 : vector<1x128xf32>
    %301 = arith.addf %290, %300 : vector<1x128xf32>
    %c27 = arith.constant 27 : index
    %302 = memref.load %arg3[%c27] : memref<32xf32, #tpu.memory_space<smem>>
    %c27_57 = arith.constant 27 : index
    %303 = memref.load %arg1[%c27_57] : memref<32xf32, #tpu.memory_space<smem>>
    %304 = vector.broadcast %303 : f32 to vector<1x128xf32>
    %305 = arith.mulf %304, %0 : vector<1x128xf32>
    %c27_58 = arith.constant 27 : index
    %306 = memref.load %arg2[%c27_58] : memref<32xf32, #tpu.memory_space<smem>>
    %307 = vector.broadcast %306 : f32 to vector<1x128xf32>
    %308 = arith.addf %305, %307 : vector<1x128xf32>
    %309 = math.tanh %308 : vector<1x128xf32>
    %310 = vector.broadcast %302 : f32 to vector<1x128xf32>
    %311 = arith.mulf %310, %309 : vector<1x128xf32>
    %312 = arith.addf %301, %311 : vector<1x128xf32>
    %c28 = arith.constant 28 : index
    %313 = memref.load %arg3[%c28] : memref<32xf32, #tpu.memory_space<smem>>
    %c28_59 = arith.constant 28 : index
    %314 = memref.load %arg1[%c28_59] : memref<32xf32, #tpu.memory_space<smem>>
    %315 = vector.broadcast %314 : f32 to vector<1x128xf32>
    %316 = arith.mulf %315, %0 : vector<1x128xf32>
    %c28_60 = arith.constant 28 : index
    %317 = memref.load %arg2[%c28_60] : memref<32xf32, #tpu.memory_space<smem>>
    %318 = vector.broadcast %317 : f32 to vector<1x128xf32>
    %319 = arith.addf %316, %318 : vector<1x128xf32>
    %320 = math.tanh %319 : vector<1x128xf32>
    %321 = vector.broadcast %313 : f32 to vector<1x128xf32>
    %322 = arith.mulf %321, %320 : vector<1x128xf32>
    %323 = arith.addf %312, %322 : vector<1x128xf32>
    %c29 = arith.constant 29 : index
    %324 = memref.load %arg3[%c29] : memref<32xf32, #tpu.memory_space<smem>>
    %c29_61 = arith.constant 29 : index
    %325 = memref.load %arg1[%c29_61] : memref<32xf32, #tpu.memory_space<smem>>
    %326 = vector.broadcast %325 : f32 to vector<1x128xf32>
    %327 = arith.mulf %326, %0 : vector<1x128xf32>
    %c29_62 = arith.constant 29 : index
    %328 = memref.load %arg2[%c29_62] : memref<32xf32, #tpu.memory_space<smem>>
    %329 = vector.broadcast %328 : f32 to vector<1x128xf32>
    %330 = arith.addf %327, %329 : vector<1x128xf32>
    %331 = math.tanh %330 : vector<1x128xf32>
    %332 = vector.broadcast %324 : f32 to vector<1x128xf32>
    %333 = arith.mulf %332, %331 : vector<1x128xf32>
    %334 = arith.addf %323, %333 : vector<1x128xf32>
    %c30 = arith.constant 30 : index
    %335 = memref.load %arg3[%c30] : memref<32xf32, #tpu.memory_space<smem>>
    %c30_63 = arith.constant 30 : index
    %336 = memref.load %arg1[%c30_63] : memref<32xf32, #tpu.memory_space<smem>>
    %337 = vector.broadcast %336 : f32 to vector<1x128xf32>
    %338 = arith.mulf %337, %0 : vector<1x128xf32>
    %c30_64 = arith.constant 30 : index
    %339 = memref.load %arg2[%c30_64] : memref<32xf32, #tpu.memory_space<smem>>
    %340 = vector.broadcast %339 : f32 to vector<1x128xf32>
    %341 = arith.addf %338, %340 : vector<1x128xf32>
    %342 = math.tanh %341 : vector<1x128xf32>
    %343 = vector.broadcast %335 : f32 to vector<1x128xf32>
    %344 = arith.mulf %343, %342 : vector<1x128xf32>
    %345 = arith.addf %334, %344 : vector<1x128xf32>
    %c31 = arith.constant 31 : index
    %346 = memref.load %arg3[%c31] : memref<32xf32, #tpu.memory_space<smem>>
    %c31_65 = arith.constant 31 : index
    %347 = memref.load %arg1[%c31_65] : memref<32xf32, #tpu.memory_space<smem>>
    %348 = vector.broadcast %347 : f32 to vector<1x128xf32>
    %349 = arith.mulf %348, %0 : vector<1x128xf32>
    %c31_66 = arith.constant 31 : index
    %350 = memref.load %arg2[%c31_66] : memref<32xf32, #tpu.memory_space<smem>>
    %351 = vector.broadcast %350 : f32 to vector<1x128xf32>
    %352 = arith.addf %349, %351 : vector<1x128xf32>
    %353 = math.tanh %352 : vector<1x128xf32>
    %354 = vector.broadcast %346 : f32 to vector<1x128xf32>
    %355 = arith.mulf %354, %353 : vector<1x128xf32>
    %356 = arith.addf %345, %355 : vector<1x128xf32>
    %c0_67 = arith.constant 0 : index
    %c0_68 = arith.constant 0 : index
    %357 = vector.load %arg6[%c0_67, %c0_68] : memref<1x128xf32, #tpu.memory_space<vmem>>, vector<1x128xf32>
    tpu.vector_store %arg6[%c0_67, %c0_68], %356 {strides = array<i32>} : memref<1x128xf32, #tpu.memory_space<vmem>>, vector<1x128xf32>,
    return
  }
  func.func @transform_0(%arg0: i32) -> i32 {
    %c0_i32 = arith.constant 0 : i32
    %c0_i32_0 = arith.constant 0 : i32
    return %c0_i32 : i32
  }
  func.func @transform_1(%arg0: i32) -> i32 {
    %c0_i32 = arith.constant 0 : i32
    %c0_i32_0 = arith.constant 0 : i32
    return %c0_i32 : i32
  }
  func.func @transform_2(%arg0: i32) -> i32 {
    %c0_i32 = arith.constant 0 : i32
    %c0_i32_0 = arith.constant 0 : i32
    return %c0_i32 : i32
  }
  func.func @transform_3(%arg0: i32) -> i32 {
    %c0_i32 = arith.constant 0 : i32
    %c0_i32_0 = arith.constant 0 : i32
    return %c0_i32 : i32
  }
  func.func @transform_4(%arg0: i32) -> (i32, i32) {
    %c0_i32 = arith.constant 0 : i32
    %c0_i32_0 = arith.constant 0 : i32
    return %arg0, %c0_i32 : i32, i32
  }
  func.func @transform_5(%arg0: i32) -> (i32, i32) {
    %c0_i32 = arith.constant 0 : i32
    %c0_i32_0 = arith.constant 0 : i32
    return %arg0, %c0_i32 : i32, i32
  }
}

</mosaic_0001>

<llo_original>
// kernel: tpu_custom_call.1
$region0: #{tpu_custom_call.1}
  #allocation0 [shape = 'u32[]', space=smem, size = 0x4, offset = 0x4, fixed_abs, tag = 'smem constant byte address 0x4 - core index']
  #allocation1 [shape = 'u32[72,128]{1,0:T(1,128)}', space=vmem, size = 0x9000, scoped, tag = 'internal scratch']
  #allocation2 [shape = 'f32[1]{0:T(128)S(6)}', space=smem, size = 0x200, scoped, tag = 'scoped memory for tpu_custom_call.1']
  %s0 = inlined_call_operand.vmem [shape: f32[32], index: 0, kind: input, shape index: {}]
  %s1 = inlined_call_operand.vmem [shape: f32[32], index: 1, kind: input, shape index: {}]
  %s2 = inlined_call_operand.vmem [shape: f32[32], index: 2, kind: input, shape index: {}]
  %s3 = inlined_call_operand.<no memory space> [shape: f32[1], index: 3, kind: input, shape index: {}]
  %s4 = inlined_call_operand.vmem [shape: f32[1,128], index: 4, kind: input, shape index: {}]
  %s5 = inlined_call_operand.hbm [shape: f32[1,128], index: 5, kind: output, shape index: {}]
  %s6 = sld [smem:[#allocation0]]
  $region42: #{tpu_custom_call.1} parent=0
    _
  %s8 = ssub.s32 1, %s6
  %s9 = scalar_select 0, %s8, %s6
  %10 = sst [smem:[#allocation2]] %s3
  $region1: #{tpu_custom_call.1} parent=0
    #allocation3 [shape = 'u8[512]{0}', space=smem, size = 0x200, scoped, tag = 'input window, operand 0, single buffered']
    #allocation4 [shape = 's32[1]{0}', space=sflag, size = 0x4, scoped, tag = 'scoped memory for tpu_custom_call.1']
    #allocation5 [shape = 's32[1]{0}', space=sflag, size = 0x4, scoped, tag = 'scoped memory for tpu_custom_call.1']
    #allocation6 [shape = 'u8[512]{0}', space=smem, size = 0x200, scoped, tag = 'input window, operand 1, single buffered']
    #allocation7 [shape = 's32[1]{0}', space=sflag, size = 0x4, scoped, tag = 'scoped memory for tpu_custom_call.1']
    #allocation8 [shape = 'u8[512]{0}', space=smem, size = 0x200, scoped, tag = 'input window, operand 2, single buffered']
    #allocation9 [shape = 'u8[512]{0}', space=vmem, size = 0x400, scoped, tag = 'output window, operand 0, single buffered']
    %11 = vsyncpa [#allocation5], 0
    %12 = vsyncpa [#allocation7], 0
    %13 = vsyncpa [#allocation4], 0
    // Predicated region
    $region2: #{tpu_custom_call.1} parent=1 // pred_check
      _
    $region3: #{tpu_custom_call.1} parent=1 // pred_check_branch
      %15 = sbr.rel (0) target = $region5
    $region4: #{tpu_custom_call.1} parent=1 // pred_region
      %17 = vsyncadd [#allocation5], 0
      %s19 = sshll.u32 %s0, 4
      %s20 = int_to_ptr.vmem [resolvable:$true] %s19
      %22 = dma.vmem_to_smem %s20, 16, [#allocation3], [#allocation5]
    $region5: #{tpu_custom_call.1} parent=1 // pred_fallthru
      _
    // Predicated region
    $region6: #{tpu_custom_call.1} parent=1 // pred_check
      _
    $region7: #{tpu_custom_call.1} parent=1 // pred_check_branch
      %24 = sbr.rel (0) target = $region9
    $region8: #{tpu_custom_call.1} parent=1 // pred_region
      %26 = vsyncadd [#allocation7], 0
      %s28 = sshll.u32 %s1, 4
      %s29 = int_to_ptr.vmem [resolvable:$true] %s28
      %31 = dma.vmem_to_smem %s29, 16, [#allocation6], [#allocation7]
    $region9: #{tpu_custom_call.1} parent=1 // pred_fallthru
      _
    // Predicated region
    $region10: #{tpu_custom_call.1} parent=1 // pred_check
      _
    $region11: #{tpu_custom_call.1} parent=1 // pred_check_branch
      %33 = sbr.rel (0) target = $region13
    $region12: #{tpu_custom_call.1} parent=1 // pred_region
      %35 = vsyncadd [#allocation7], 0
      %s37 = sshll.u32 %s2, 4
      %s38 = int_to_ptr.vmem [resolvable:$true] %s37
      %40 = dma.vmem_to_smem %s38, 16, [#allocation8], [#allocation7]
    $region13: #{tpu_custom_call.1} parent=1 // pred_fallthru
      _
    // Predicated region
    $region14: #{tpu_custom_call.1} parent=1 // pred_check
      _
    $region15: #{tpu_custom_call.1} parent=1 // pred_check_branch
      %42 = sbr.rel (0) target = $region17
    $region16: #{tpu_custom_call.1} parent=1 // pred_region
      _
    $region17: #{tpu_custom_call.1} parent=1 // pred_fallthru
      _
    // Predicated region
    $region18: #{tpu_custom_call.1} parent=1 // pred_check
      _
    $region19: #{tpu_custom_call.1} parent=1 // pred_check_branch
      %44 = sbr.rel (0) target = $region21
    $region20: #{tpu_custom_call.1} parent=1 // pred_region
      _
    $region21: #{tpu_custom_call.1} parent=1 // pred_fallthru
      _
    // Predicated region
    $region22: #{tpu_custom_call.1} parent=1 // pred_check
      _
    $region23: #{tpu_custom_call.1} parent=1 // pred_check_branch
      %46 = sbr.rel (0) target = $region25
    $region24: #{tpu_custom_call.1} parent=1 // pred_region
      %48 = dma.done [#allocation5], 16
    $region25: #{tpu_custom_call.1} parent=1 // pred_fallthru
      _
    // Predicated region
    $region26: #{tpu_custom_call.1} parent=1 // pred_check
      _
    $region27: #{tpu_custom_call.1} parent=1 // pred_check_branch
      %50 = sbr.rel (0) target = $region29
    $region28: #{tpu_custom_call.1} parent=1 // pred_region
      %52 = dma.done [#allocation7], 16
    $region29: #{tpu_custom_call.1} parent=1 // pred_fallthru
      _
    // Predicated region
    $region30: #{tpu_custom_call.1} parent=1 // pred_check
      _
    $region31: #{tpu_custom_call.1} parent=1 // pred_check_branch
      %54 = sbr.rel (0) target = $region33
    $region32: #{tpu_custom_call.1} parent=1 // pred_region
      %56 = dma.done [#allocation7], 16
    $region33: #{tpu_custom_call.1} parent=1 // pred_fallthru
      _
    %57 = sfence
    %v58 = vld [vmem:[%s4] sm:$0x1]
    %s59 = sld [smem:[#allocation2]]
    %v60 = vstv %s59
    %v61 = vadd.f32 %v60, 0.0
    %s62 = sld [smem:[#allocation8]]
    %s63 = sld [smem:[#allocation3]]
    %v64 = vstv %s63
    %v65 = vmul.f32 %v64, %v58
    %s66 = sld [smem:[#allocation6]]
    %v67 = vstv %s66
    %v68 = vadd.f32 %v65, %v67
    %v69 = vtanh.pop %v68
    %v70 = vstv %s62
    %v71 = vmul.f32 %v70, %v69
    %v72 = vadd.f32 %v61, %v71
    %s73 = sld [smem:[#allocation8 + $0x1]]
    %s74 = sld [smem:[#allocation3 + $0x1]]
    %v75 = vstv %s74
    %v76 = vmul.f32 %v75, %v58
    %s77 = sld [smem:[#allocation6 + $0x1]]
    %v78 = vstv %s77
    %v79 = vadd.f32 %v76, %v78
    %v80 = vtanh.pop %v79
    %v81 = vstv %s73
    %v82 = vmul.f32 %v81, %v80
    %v83 = vadd.f32 %v72, %v82
    %s84 = sld [smem:[#allocation8 + $0x2]]
    %s85 = sld [smem:[#allocation3 + $0x2]]
    %v86 = vstv %s85
    %v87 = vmul.f32 %v86, %v58
    %s88 = sld [smem:[#allocation6 + $0x2]]
    %v89 = vstv %s88
    %v90 = vadd.f32 %v87, %v89
    %v91 = vtanh.pop %v90
    %v92 = vstv %s84
    %v93 = vmul.f32 %v92, %v91
    %v94 = vadd.f32 %v83, %v93
    %s95 = sld [smem:[#allocation8 + $0x3]]
    %s96 = sld [smem:[#allocation3 + $0x3]]
    %v97 = vstv %s96
    %v98 = vmul.f32 %v97, %v58
    %s99 = sld [smem:[#allocation6 + $0x3]]
    %v100 = vstv %s99
    %v101 = vadd.f32 %v98, %v100
    %v102 = vtanh.pop %v101
    %v103 = vstv %s95
    %v104 = vmul.f32 %v103, %v102
    %v105 = vadd.f32 %v94, %v104
    %s106 = sld [smem:[#allocation8 + $0x4]]
    %s107 = sld [smem:[#allocation3 + $0x4]]
    %v108 = vstv %s107
    %v109 = vmul.f32 %v108, %v58
    %s110 = sld [smem:[#allocation6 + $0x4]]
    %v111 = vstv %s110
    %v112 = vadd.f32 %v109, %v111
    %v113 = vtanh.pop %v112
    %v114 = vstv %s106
    %v115 = vmul.f32 %v114, %v113
    %v116 = vadd.f32 %v105, %v115
    %s117 = sld [smem:[#allocation8 + $0x5]]
    %s118 = sld [smem:[#allocation3 + $0x5]]
    %v119 = vstv %s118
    %v120 = vmul.f32 %v119, %v58
    %s121 = sld [smem:[#allocation6 + $0x5]]
    %v122 = vstv %s121
    %v123 = vadd.f32 %v120, %v122
    %v124 = vtanh.pop %v123
    %v125 = vstv %s117
    %v126 = vmul.f32 %v125, %v124
    %v127 = vadd.f32 %v116, %v126
    %s128 = sld [smem:[#allocation8 + $0x6]]
    %s129 = sld [smem:[#allocation3 + $0x6]]
    %v130 = vstv %s129
    %v131 = vmul.f32 %v130, %v58
    %s132 = sld [smem:[#allocation6 + $0x6]]
    %v133 = vstv %s132
    %v134 = vadd.f32 %v131, %v133
    %v135 = vtanh.pop %v134
    %v136 = vstv %s128
    %v137 = vmul.f32 %v136, %v135
    %v138 = vadd.f32 %v127, %v137
    %s139 = sld [smem:[#allocation8 + $0x7]]
    %s140 = sld [smem:[#allocation3 + $0x7]]
    %v141 = vstv %s140
    %v142 = vmul.f32 %v141, %v58
    %s143 = sld [smem:[#allocation6 + $0x7]]
    %v144 = vstv %s143
    %v145 = vadd.f32 %v142, %v144
    %v146 = vtanh.pop %v145
    %v147 = vstv %s139
    %v148 = vmul.f32 %v147, %v146
    %v149 = vadd.f32 %v138, %v148
    %s150 = sld [smem:[#allocation8 + $0x8]]
    %s151 = sld [smem:[#allocation3 + $0x8]]
    %v152 = vstv %s151
    %v153 = vmul.f32 %v152, %v58
    %s154 = sld [smem:[#allocation6 + $0x8]]
    %v155 = vstv %s154
    %v156 = vadd.f32 %v153, %v155
    %v157 = vtanh.pop %v156
    %v158 = vstv %s150
    %v159 = vmul.f32 %v158, %v157
    %v160 = vadd.f32 %v149, %v159
    %s161 = sld [smem:[#allocation8 + $0x9]]
    %s162 = sld [smem:[#allocation3 + $0x9]]
    %v163 = vstv %s162
    %v164 = vmul.f32 %v163, %v58
    %s165 = sld [smem:[#allocation6 + $0x9]]
    %v166 = vstv %s165
    %v167 = vadd.f32 %v164, %v166
    %v168 = vtanh.pop %v167
    %v169 = vstv %s161
    %v170 = vmul.f32 %v169, %v168
    %v171 = vadd.f32 %v160, %v170
    %s172 = sld [smem:[#allocation8 + $0xa]]
    %s173 = sld [smem:[#allocation3 + $0xa]]
    %v174 = vstv %s173
    %v175 = vmul.f32 %v174, %v58
    %s176 = sld [smem:[#allocation6 + $0xa]]
    %v177 = vstv %s176
    %v178 = vadd.f32 %v175, %v177
    %v179 = vtanh.pop %v178
    %v180 = vstv %s172
    %v181 = vmul.f32 %v180, %v179
    %v182 = vadd.f32 %v171, %v181
    %s183 = sld [smem:[#allocation8 + $0xb]]
    %s184 = sld [smem:[#allocation3 + $0xb]]
    %v185 = vstv %s184
    %v186 = vmul.f32 %v185, %v58
    %s187 = sld [smem:[#allocation6 + $0xb]]
    %v188 = vstv %s187
    %v189 = vadd.f32 %v186, %v188
    %v190 = vtanh.pop %v189
    %v191 = vstv %s183
    %v192 = vmul.f32 %v191, %v190
    %v193 = vadd.f32 %v182, %v192
    %s194 = sld [smem:[#allocation8 + $0xc]]
    %s195 = sld [smem:[#allocation3 + $0xc]]
    %v196 = vstv %s195
    %v197 = vmul.f32 %v196, %v58
    %s198 = sld [smem:[#allocation6 + $0xc]]
    %v199 = vstv %s198
    %v200 = vadd.f32 %v197, %v199
    %v201 = vtanh.pop %v200
    %v202 = vstv %s194
    %v203 = vmul.f32 %v202, %v201
    %v204 = vadd.f32 %v193, %v203
    %s205 = sld [smem:[#allocation8 + $0xd]]
    %s206 = sld [smem:[#allocation3 + $0xd]]
    %v207 = vstv %s206
    %v208 = vmul.f32 %v207, %v58
    %s209 = sld [smem:[#allocation6 + $0xd]]
    %v210 = vstv %s209
    %v211 = vadd.f32 %v208, %v210
    %v212 = vtanh.pop %v211
    %v213 = vstv %s205
    %v214 = vmul.f32 %v213, %v212
    %v215 = vadd.f32 %v204, %v214
    %s216 = sld [smem:[#allocation8 + $0xe]]
    %s217 = sld [smem:[#allocation3 + $0xe]]
    %v218 = vstv %s217
    %v219 = vmul.f32 %v218, %v58
    %s220 = sld [smem:[#allocation6 + $0xe]]
    %v221 = vstv %s220
    %v222 = vadd.f32 %v219, %v221
    %v223 = vtanh.pop %v222
    %v224 = vstv %s216
    %v225 = vmul.f32 %v224, %v223
    %v226 = vadd.f32 %v215, %v225
    %s227 = sld [smem:[#allocation8 + $0xf]]
    %s228 = sld [smem:[#allocation3 + $0xf]]
    %v229 = vstv %s228
    %v230 = vmul.f32 %v229, %v58
    %s231 = sld [smem:[#allocation6 + $0xf]]
    %v232 = vstv %s231
    %v233 = vadd.f32 %v230, %v232
    %v234 = vtanh.pop %v233
    %v235 = vstv %s227
    %v236 = vmul.f32 %v235, %v234
    %v237 = vadd.f32 %v226, %v236
    %s238 = sld [smem:[#allocation8 + $0x10]]
    %s239 = sld [smem:[#allocation3 + $0x10]]
    %v240 = vstv %s239
    %v241 = vmul.f32 %v240, %v58
    %s242 = sld [smem:[#allocation6 + $0x10]]
    %v243 = vstv %s242
    %v244 = vadd.f32 %v241, %v243
    %v245 = vtanh.pop %v244
    %v246 = vstv %s238
    %v247 = vmul.f32 %v246, %v245
    %v248 = vadd.f32 %v237, %v247
    %s249 = sld [smem:[#allocation8 + $0x11]]
    %s250 = sld [smem:[#allocation3 + $0x11]]
    %v251 = vstv %s250
    %v252 = vmul.f32 %v251, %v58
    %s253 = sld [smem:[#allocation6 + $0x11]]
    %v254 = vstv %s253
    %v255 = vadd.f32 %v252, %v254
    %v256 = vtanh.pop %v255
    %v257 = vstv %s249
    %v258 = vmul.f32 %v257, %v256
    %v259 = vadd.f32 %v248, %v258
    %s260 = sld [smem:[#allocation8 + $0x12]]
    %s261 = sld [smem:[#allocation3 + $0x12]]
    %v262 = vstv %s261
    %v263 = vmul.f32 %v262, %v58
    %s264 = sld [smem:[#allocation6 + $0x12]]
    %v265 = vstv %s264
    %v266 = vadd.f32 %v263, %v265
    %v267 = vtanh.pop %v266
    %v268 = vstv %s260
    %v269 = vmul.f32 %v268, %v267
    %v270 = vadd.f32 %v259, %v269
    %s271 = sld [smem:[#allocation8 + $0x13]]
    %s272 = sld [smem:[#allocation3 + $0x13]]
    %v273 = vstv %s272
    %v274 = vmul.f32 %v273, %v58
    %s275 = sld [smem:[#allocation6 + $0x13]]
    %v276 = vstv %s275
    %v277 = vadd.f32 %v274, %v276
    %v278 = vtanh.pop %v277
    %v279 = vstv %s271
    %v280 = vmul.f32 %v279, %v278
    %v281 = vadd.f32 %v270, %v280
    %s282 = sld [smem:[#allocation8 + $0x14]]
    %s283 = sld [smem:[#allocation3 + $0x14]]
    %v284 = vstv %s283
    %v285 = vmul.f32 %v284, %v58
    %s286 = sld [smem:[#allocation6 + $0x14]]
    %v287 = vstv %s286
    %v288 = vadd.f32 %v285, %v287
    %v289 = vtanh.pop %v288
    %v290 = vstv %s282
    %v291 = vmul.f32 %v290, %v289
    %v292 = vadd.f32 %v281, %v291
    %s293 = sld [smem:[#allocation8 + $0x15]]
    %s294 = sld [smem:[#allocation3 + $0x15]]
    %v295 = vstv %s294
    %v296 = vmul.f32 %v295, %v58
    %s297 = sld [smem:[#allocation6 + $0x15]]
    %v298 = vstv %s297
    %v299 = vadd.f32 %v296, %v298
    %v300 = vtanh.pop %v299
    %v301 = vstv %s293
    %v302 = vmul.f32 %v301, %v300
    %v303 = vadd.f32 %v292, %v302
    %s304 = sld [smem:[#allocation8 + $0x16]]
    %s305 = sld [smem:[#allocation3 + $0x16]]
    %v306 = vstv %s305
    %v307 = vmul.f32 %v306, %v58
    %s308 = sld [smem:[#allocation6 + $0x16]]
    %v309 = vstv %s308
    %v310 = vadd.f32 %v307, %v309
    %v311 = vtanh.pop %v310
    %v312 = vstv %s304
    %v313 = vmul.f32 %v312, %v311
    %v314 = vadd.f32 %v303, %v313
    %s315 = sld [smem:[#allocation8 + $0x17]]
    %s316 = sld [smem:[#allocation3 + $0x17]]
    %v317 = vstv %s316
    %v318 = vmul.f32 %v317, %v58
    %s319 = sld [smem:[#allocation6 + $0x17]]
    %v320 = vstv %s319
    %v321 = vadd.f32 %v318, %v320
    %v322 = vtanh.pop %v321
    %v323 = vstv %s315
    %v324 = vmul.f32 %v323, %v322
    %v325 = vadd.f32 %v314, %v324
    %s326 = sld [smem:[#allocation8 + $0x18]]
    %s327 = sld [smem:[#allocation3 + $0x18]]
    %v328 = vstv %s327
    %v329 = vmul.f32 %v328, %v58
    %s330 = sld [smem:[#allocation6 + $0x18]]
    %v331 = vstv %s330
    %v332 = vadd.f32 %v329, %v331
    %v333 = vtanh.pop %v332
    %v334 = vstv %s326
    %v335 = vmul.f32 %v334, %v333
    %v336 = vadd.f32 %v325, %v335
    %s337 = sld [smem:[#allocation8 + $0x19]]
    %s338 = sld [smem:[#allocation3 + $0x19]]
    %v339 = vstv %s338
    %v340 = vmul.f32 %v339, %v58
    %s341 = sld [smem:[#allocation6 + $0x19]]
    %v342 = vstv %s341
    %v343 = vadd.f32 %v340, %v342
    %v344 = vtanh.pop %v343
    %v345 = vstv %s337
    %v346 = vmul.f32 %v345, %v344
    %v347 = vadd.f32 %v336, %v346
    %s348 = sld [smem:[#allocation8 + $0x1a]]
    %s349 = sld [smem:[#allocation3 + $0x1a]]
    %v350 = vstv %s349
    %v351 = vmul.f32 %v350, %v58
    %s352 = sld [smem:[#allocation6 + $0x1a]]
    %v353 = vstv %s352
    %v354 = vadd.f32 %v351, %v353
    %v355 = vtanh.pop %v354
    %v356 = vstv %s348
    %v357 = vmul.f32 %v356, %v355
    %v358 = vadd.f32 %v347, %v357
    %s359 = sld [smem:[#allocation8 + $0x1b]]
    %s360 = sld [smem:[#allocation3 + $0x1b]]
    %v361 = vstv %s360
    %v362 = vmul.f32 %v361, %v58
    %s363 = sld [smem:[#allocation6 + $0x1b]]
    %v364 = vstv %s363
    %v365 = vadd.f32 %v362, %v364
    %v366 = vtanh.pop %v365
    %v367 = vstv %s359
    %v368 = vmul.f32 %v367, %v366
    %v369 = vadd.f32 %v358, %v368
    %s370 = sld [smem:[#allocation8 + $0x1c]]
    %s371 = sld [smem:[#allocation3 + $0x1c]]
    %v372 = vstv %s371
    %v373 = vmul.f32 %v372, %v58
    %s374 = sld [smem:[#allocation6 + $0x1c]]
    %v375 = vstv %s374
    %v376 = vadd.f32 %v373, %v375
    %v377 = vtanh.pop %v376
    %v378 = vstv %s370
    %v379 = vmul.f32 %v378, %v377
    %v380 = vadd.f32 %v369, %v379
    %s381 = sld [smem:[#allocation8 + $0x1d]]
    %s382 = sld [smem:[#allocation3 + $0x1d]]
    %v383 = vstv %s382
    %v384 = vmul.f32 %v383, %v58
    %s385 = sld [smem:[#allocation6 + $0x1d]]
    %v386 = vstv %s385
    %v387 = vadd.f32 %v384, %v386
    %v388 = vtanh.pop %v387
    %v389 = vstv %s381
    %v390 = vmul.f32 %v389, %v388
    %v391 = vadd.f32 %v380, %v390
    %s392 = sld [smem:[#allocation8 + $0x1e]]
    %s393 = sld [smem:[#allocation3 + $0x1e]]
    %v394 = vstv %s393
    %v395 = vmul.f32 %v394, %v58
    %s396 = sld [smem:[#allocation6 + $0x1e]]
    %v397 = vstv %s396
    %v398 = vadd.f32 %v395, %v397
    %v399 = vtanh.pop %v398
    %v400 = vstv %s392
    %v401 = vmul.f32 %v400, %v399
    %v402 = vadd.f32 %v391, %v401
    %s403 = sld [smem:[#allocation8 + $0x1f]]
    %s404 = sld [smem:[#allocation3 + $0x1f]]
    %v405 = vstv %s404
    %v406 = vmul.f32 %v405, %v58
    %s407 = sld [smem:[#allocation6 + $0x1f]]
    %v408 = vstv %s407
    %v409 = vadd.f32 %v406, %v408
    %v410 = vtanh.pop %v409
    %v411 = vstv %s403
    %v412 = vmul.f32 %v411, %v410
    %v413 = vadd.f32 %v402, %v412
    %414 = vst [vmem:[#allocation9] sm:$0x1] %v413
    // Predicated region
    $region34: #{tpu_custom_call.1} parent=1 // pred_check
      _
    $region35: #{tpu_custom_call.1} parent=1 // pred_check_branch
      %416 = sbr.rel (0) target = $region37
    $region36: #{tpu_custom_call.1} parent=1 // pred_region
      %418 = vsyncadd [#allocation4], 0
      %s420 = sshll.u32 [#allocation9], 4
      %s421 = int_to_ptr.vmem [resolvable:$true] %s420
      %s422 = sshll.u32 %s5, 4
      %s423 = int_to_ptr.hbm [resolvable:$true] %s422
      %425 = dma.vmem_to_hbm [thread:$0]  %s421, 16, %s423, [#allocation4]
    $region37: #{tpu_custom_call.1} parent=1 // pred_fallthru
      _
    // Predicated region
    $region38: #{tpu_custom_call.1} parent=1 // pred_check
      _
    $region39: #{tpu_custom_call.1} parent=1 // pred_check_branch
      %427 = sbr.rel (0) target = $region41
    $region40: #{tpu_custom_call.1} parent=1 // pred_region
      %429 = dma.done [#allocation4], 16
    $region41: #{tpu_custom_call.1} parent=1 // pred_fallthru
      _
    %430 = vsyncpa [#allocation4], 1
    %431 = vsyncpa [#allocation5], 1
    %432 = vsyncpa [#allocation7], 1

</llo_original>
